<compile_context>
chip_gen: v7x
topology: tpu7x:2x2x1
jax: 0.10.0
libtpu: 0.0.40
codegen_flags: <defaults>
</compile_context>

<pallas_src>
import jax
import jax.numpy as jnp
from jax.experimental import pallas as pl
from jax.experimental.pallas import tpu as pltpu

_LANE = 128


def _sublane_align(dtype) -> int:
    """Sublane multiple required for a non-full-extent block of this dtype."""
    itemsize = jnp.dtype(dtype).itemsize
    if itemsize >= 4:
        return 8
    if itemsize == 2:
        return 16
    return 32


def _vmem_capacity_bytes() -> int:
    """Trace-time query of physical VMEM; conservative (v7x) fallback."""
    try:
        return int(pltpu.get_tpu_info().vmem_capacity_bytes)
    except Exception:
        return 64 * 1024 * 1024


def _to_lane_slab(x):
    """Flatten to 1-D and view as a lane-dense (rows, 128) slab (tail-padded)."""
    n = x.size
    align = _sublane_align(x.dtype)
    chunk = align * _LANE
    padded = ((n + chunk - 1) // chunk) * chunk
    flat = x.reshape(-1)
    if padded != n:
        flat = jnp.pad(flat, (0, padded - n))
    return flat.reshape(padded // _LANE, _LANE)


def _from_lane_slab(slab, n, shape):
    return slab.reshape(-1)[:n].reshape(shape)


def _row_tile(rows: int, itemsize: int, align: int, max_tile_bytes: int) -> int:
    """Largest sublane-aligned row tile within the per-block byte budget."""
    budget = (max_tile_bytes // (_LANE * itemsize)) // align * align
    budget = max(budget, align)
    return min(rows, budget)


def _adapter_template_kernel(lat_ref, spk_ref, lat_out_ref, spk_out_ref):
    # TODO(synk): concrete adapter subclasses replace this identity body with
    # fused emotion-conditioning compute (e.g. jnp.dot into an f32 VMEM
    # accumulator); the copies then become free filler under the matmul.
    lat_out_ref[...] = lat_ref[...]
    # Speaker block is resident (same block index every step); writing it each
    # step is idempotent and keeps the grid axis safely "parallel" on v7x.
    spk_out_ref[...] = spk_ref[...]


@jax.jit
def _adapter_template_forward(gpt_cond_latent, speaker_embedding):
    """Single fused pallas_call template over lane-dense slabs of both inputs."""
    lat_shape, spk_shape = gpt_cond_latent.shape, speaker_embedding.shape
    lat_n, spk_n = gpt_cond_latent.size, speaker_embedding.size

    lat = _to_lane_slab(gpt_cond_latent)
    spk = _to_lane_slab(speaker_embedding)

    lat_rows, spk_rows = lat.shape[0], spk.shape[0]
    lat_item, spk_item = lat.dtype.itemsize, spk.dtype.itemsize

    # Per-generation byte budget: ~8 MiB/block on 128 MiB VMEM (v5e/v6e),
    # ~4 MiB/block on 64 MiB VMEM (v7x).
    vmem_cap = _vmem_capacity_bytes()
    max_tile_bytes = max(512 * 1024, vmem_cap // 16)

    align = _sublane_align(lat.dtype)
    row_tile = _row_tile(lat_rows, lat_item, align, max_tile_bytes)

    lat_block_bytes = row_tile * _LANE * lat_item
    spk_block_bytes = spk_rows * _LANE * spk_item
    # in + out, double-buffered, plus slack; never more than half of VMEM so
    # a subclass has headroom for accumulators / compute scratch.
    needed = 2 * 2 * (lat_block_bytes + spk_block_bytes) + (1 << 20)
    vmem_limit = int(min(vmem_cap // 2, max(needed, 8 << 20)))

    grid = (pl.cdiv(lat_rows, row_tile),)

    lat_out, spk_out = pl.pallas_call(
        _adapter_template_kernel,
        out_shape=(
            jax.ShapeDtypeStruct(lat.shape, lat.dtype),
            jax.ShapeDtypeStruct(spk.shape, spk.dtype),
        ),
        grid=grid,
        in_specs=[
            pl.BlockSpec((row_tile, _LANE), lambda i: (i, 0)),
            pl.BlockSpec((spk_rows, _LANE), lambda i: (0, 0)),
        ],
        out_specs=(
            pl.BlockSpec((row_tile, _LANE), lambda i: (i, 0)),
            pl.BlockSpec((spk_rows, _LANE), lambda i: (0, 0)),
        ),
        compiler_params=pltpu.CompilerParams(
            dimension_semantics=("parallel",),  # v7x: shards grid across 2 TCs
            vmem_limit_bytes=vmem_limit,
        ),
    )(lat, spk)

    return (
        _from_lane_slab(lat_out, lat_n, lat_shape),
        _from_lane_slab(spk_out, spk_n, spk_shape),
    )


class BaseAdapterPallas:
    """JAX/Pallas counterpart of the abstract BaseAdapter interface."""

    def __init__(self, emotion_dim: int = 256):
        self.emotion_dim = emotion_dim  # stored, unused (as in the PyTorch base)

    def forward(self, gpt_cond_latent, speaker_embedding, *args, **kwargs):
        # Abstract base defines no compute: the faithful forward contract is
        # the identity pass-through — return inputs directly, no kernel launch,
        # no HBM traffic.  Concrete subclasses override this with a fused
        # pallas_call in the style of _adapter_template_forward.
        return gpt_cond_latent, speaker_embedding

    __call__ = forward

    def encode_emotion(self, *emotion_inputs):
        # TODO(synk): abstract in the source module; no semantics to implement.
        raise NotImplementedError("encode_emotion is abstract in BaseAdapter")


if __name__ == "__main__":
    key = jax.random.PRNGKey(0)
    k1, k2 = jax.random.split(key)

    # Small shapes consistent with the XTTS-style conditioning this adapter
    # interface wraps: (batch=2, cond_tokens=8, latent=32) and (batch=2, 16, 1).
    gpt_cond_latent = jax.random.normal(k1, (2, 8, 32), dtype=jnp.float32)
    speaker_embedding = jax.random.normal(k2, (2, 16, 1), dtype=jnp.float32)

    adapter = BaseAdapterPallas(emotion_dim=256)

    # 1) Base-class forward: zero-cost identity pass-through (no kernel).
    lat_id, spk_id = adapter.forward(gpt_cond_latent, speaker_embedding)
    assert lat_id is gpt_cond_latent and spk_id is speaker_embedding

    # 2) Fused Pallas template kernel (what concrete subclasses build on).
    lat_out, spk_out = _adapter_template_forward(gpt_cond_latent, speaker_embedding)
    jax.block_until_ready((lat_out, spk_out))

    assert lat_out.shape == gpt_cond_latent.shape
    assert spk_out.shape == speaker_embedding.shape
    assert jnp.allclose(lat_out, gpt_cond_latent)
    assert jnp.allclose(spk_out, speaker_embedding)

    print("KERNEL_OK")
</pallas_src>

<mosaic_0001>
module attributes {stable_mosaic.version = 11 : i64} {
  func.func @_adapter_template_kernel(%arg0: i32, %arg1: memref<8x128xf32, #tpu.memory_space<vmem>>, %arg2: memref<8x128xf32, #tpu.memory_space<vmem>>, %arg3: memref<8x128xf32, #tpu.memory_space<vmem>>, %arg4: memref<8x128xf32, #tpu.memory_space<vmem>>) attributes {dimension_semantics = [#tpu.dimension_semantics<parallel>], iteration_bounds = array<i64: 1>, scalar_prefetch = 0 : i64, scratch_operands = 0 : i64, tpu.core_type = #tpu.core_type<tc>, window_params = [{transform_indices = @transform_0, window_bounds = array<i64: 8, 128>}, {pipeline_mode = #tpu.pipeline_mode<synchronous>, transform_indices = @transform_1, window_bounds = array<i64: 8, 128>}, {transform_indices = @transform_2, window_bounds = array<i64: 8, 128>}, {pipeline_mode = #tpu.pipeline_mode<synchronous>, transform_indices = @transform_3, window_bounds = array<i64: 8, 128>}]} {
    %c0 = arith.constant 0 : index
    %c0_0 = arith.constant 0 : index
    %0 = vector.load %arg1[%c0, %c0_0] : memref<8x128xf32, #tpu.memory_space<vmem>>, vector<8x128xf32>
    %c0_1 = arith.constant 0 : index
    %c0_2 = arith.constant 0 : index
    %1 = vector.load %arg3[%c0_1, %c0_2] : memref<8x128xf32, #tpu.memory_space<vmem>>, vector<8x128xf32>
    tpu.vector_store %arg3[%c0_1, %c0_2], %0 {strides = array<i32>} : memref<8x128xf32, #tpu.memory_space<vmem>>, vector<8x128xf32>,
    %c0_3 = arith.constant 0 : index
    %c0_4 = arith.constant 0 : index
    %2 = vector.load %arg2[%c0_3, %c0_4] : memref<8x128xf32, #tpu.memory_space<vmem>>, vector<8x128xf32>
    %c0_5 = arith.constant 0 : index
    %c0_6 = arith.constant 0 : index
    %3 = vector.load %arg4[%c0_5, %c0_6] : memref<8x128xf32, #tpu.memory_space<vmem>>, vector<8x128xf32>
    tpu.vector_store %arg4[%c0_5, %c0_6], %2 {strides = array<i32>} : memref<8x128xf32, #tpu.memory_space<vmem>>, vector<8x128xf32>,
    return
  }
  func.func @transform_0(%arg0: i32) -> (i32, i32) {
    %c0_i32 = arith.constant 0 : i32
    %c0_i32_0 = arith.constant 0 : i32
    return %arg0, %c0_i32 : i32, i32
  }
  func.func @transform_1(%arg0: i32) -> (i32, i32) {
    %c0_i32 = arith.constant 0 : i32
    %c0_i32_0 = arith.constant 0 : i32
    %c0_i32_1 = arith.constant 0 : i32
    return %c0_i32, %c0_i32_0 : i32, i32
  }
  func.func @transform_2(%arg0: i32) -> (i32, i32) {
    %c0_i32 = arith.constant 0 : i32
    %c0_i32_0 = arith.constant 0 : i32
    return %arg0, %c0_i32 : i32, i32
  }
  func.func @transform_3(%arg0: i32) -> (i32, i32) {
    %c0_i32 = arith.constant 0 : i32
    %c0_i32_0 = arith.constant 0 : i32
    %c0_i32_1 = arith.constant 0 : i32
    return %c0_i32, %c0_i32_0 : i32, i32
  }
}

</mosaic_0001>

<llo_original>
// kernel: _adapter_template_forward.1
$region0: #{_adapter_template_forward.1}
  #allocation0 [shape = 'u32[]', space=smem, size = 0x4, offset = 0x4, fixed_abs, tag = 'smem constant byte address 0x4 - core index']
  #allocation1 [shape = 'u32[144,128]{1,0:T(1,128)}', space=vmem, size = 0x12000, scoped, tag = 'internal scratch']
  %s0 = inlined_call_operand.vmem [shape: f32[8,128], index: 0, kind: input, shape index: {}]
  %s1 = inlined_call_operand.vmem [shape: f32[8,128], index: 1, kind: input, shape index: {}]
  %s2 = inlined_call_operand.vmem [shape: f32[8,128], index: 2, kind: output, shape index: {0}]
  %s3 = inlined_call_operand.vmem [shape: f32[8,128], index: 3, kind: output, shape index: {1}]
  %4 = xla_tuple %s2, %s3
  %s5 = sld [smem:[#allocation0]]
  $region26: #{_adapter_template_forward.1} parent=0
    _
  %s7 = ssub.s32 1, %s5
  %s8 = scalar_select 0, %s7, %s5
  // Predicated region
  $region2: #{_adapter_template_forward.1} parent=0 // pred_check
    _
  $region3: #{_adapter_template_forward.1} parent=0 // pred_check_branch
    %10 = sbr.rel (0) target = $region5
  $region4: #{_adapter_template_forward.1} parent=0 // pred_region
    _
  $region5: #{_adapter_template_forward.1} parent=0 // pred_fallthru
    _
  // Predicated region
  $region6: #{_adapter_template_forward.1} parent=0 // pred_check
    _
  $region7: #{_adapter_template_forward.1} parent=0 // pred_check_branch
    %12 = sbr.rel (0) target = $region9
  $region8: #{_adapter_template_forward.1} parent=0 // pred_region
    _
  $region9: #{_adapter_template_forward.1} parent=0 // pred_fallthru
    _
  %v13 = vld [vmem:[%s0] sm:$0xff]
  %14 = vst [vmem:[%s2] sm:$0xff] %v13
  %v15 = vld [vmem:[%s1] sm:$0xff]
  %16 = vst [vmem:[%s3] sm:$0xff] %v15
  // Predicated region
  $region10: #{_adapter_template_forward.1} parent=0 // pred_check
    _
  $region11: #{_adapter_template_forward.1} parent=0 // pred_check_branch
    %18 = sbr.rel (0) target = $region13
  $region12: #{_adapter_template_forward.1} parent=0 // pred_region
    _
  $region13: #{_adapter_template_forward.1} parent=0 // pred_fallthru
    _
  // Predicated region
  $region14: #{_adapter_template_forward.1} parent=0 // pred_check
    _
  $region15: #{_adapter_template_forward.1} parent=0 // pred_check_branch
    %20 = sbr.rel (0) target = $region17
  $region16: #{_adapter_template_forward.1} parent=0 // pred_region
    _
  $region17: #{_adapter_template_forward.1} parent=0 // pred_fallthru
    _
  // Predicated region
  $region18: #{_adapter_template_forward.1} parent=0 // pred_check
    _
  $region19: #{_adapter_template_forward.1} parent=0 // pred_check_branch
    %22 = sbr.rel (0) target = $region21
  $region20: #{_adapter_template_forward.1} parent=0 // pred_region
    _
  $region21: #{_adapter_template_forward.1} parent=0 // pred_fallthru
    _
  // Predicated region
  $region22: #{_adapter_template_forward.1} parent=0 // pred_check
    _
  $region23: #{_adapter_template_forward.1} parent=0 // pred_check_branch
    %24 = sbr.rel (0) target = $region25
  $region24: #{_adapter_template_forward.1} parent=0 // pred_region
    _
  $region25: #{_adapter_template_forward.1} parent=0 // pred_fallthru
    _

</llo_original>
